<compile_context>
chip_gen: v7x
topology: tpu7x:2x2x1
jax: 0.10.0
libtpu: 0.0.40
codegen_flags: <defaults>
</compile_context>

<pallas_src>
import functools

import jax
import jax.numpy as jnp
from jax.experimental import pallas as pl
from jax.experimental.pallas import tpu as pltpu


_INV_SQRT2 = 0.7071067811865476


def _mlp_kernel(x_ref, w1_ref, b1_ref, w2_ref, b2_ref, o_ref, acc_ref):
    # x_ref: (tm, E)  compute dtype (bf16 default)
    # w1_ref: (E, tH), b1_ref: (1, tH) f32, w2_ref: (tH, E), b2_ref: (1, E) f32
    # o_ref: (tm, E) out dtype, acc_ref: (tm, E) f32 scratch (resident across H axis)
    h_idx = pl.program_id(1)

    @pl.when(h_idx == 0)
    def _init():
        acc_ref[...] = jnp.zeros_like(acc_ref)

    # fc1 on the MXU with f32 accumulation, then bias + exact (erf) GELU in f32
    # (matches torch.nn.GELU() default).
    h = jnp.dot(x_ref[...], w1_ref[...], preferred_element_type=jnp.float32)
    h = h + b1_ref[...]
    h = 0.5 * h * (1.0 + jax.lax.erf(h * _INV_SQRT2))

    # Partial fc2 contribution of this hidden tile, accumulated in f32.
    acc_ref[...] += jnp.dot(
        h.astype(w2_ref.dtype), w2_ref[...], preferred_element_type=jnp.float32
    )

    @pl.when(h_idx == pl.num_programs(1) - 1)
    def _finalize():
        # TODO(synk): dropout is a no-op here (drop_p=0.0 / eval mode); training-time
        # dropout would use pltpu.prng_seed + pltpu.stateful_bernoulli.
        o_ref[...] = (acc_ref[...] + b2_ref[...]).astype(o_ref.dtype)


def _round_up(x, m):
    return ((x + m - 1) // m) * m


@functools.partial(jax.jit, static_argnames=("tile_m", "tile_h", "compute_dtype"))
def mlp_forward(x, w1, b1, w2, b2, *, tile_m=256, tile_h=512,
                compute_dtype=jnp.bfloat16):
    """x: (B, T, E); w1: (E, H); b1: (H,); w2: (H, E); b2: (E,). Returns (B, T, E)."""
    B, T, E = x.shape
    H = w1.shape[1]
    M = B * T
    out_dtype = x.dtype

    # Matmul operands in the (bf16) compute dtype; biases + accumulation in f32.
    x2d = x.reshape(M, E).astype(compute_dtype)
    w1c = w1.astype(compute_dtype)
    w2c = w2.astype(compute_dtype)
    b1r = b1.reshape(1, H).astype(jnp.float32)
    b2r = b2.reshape(1, E).astype(jnp.float32)

    # Row tile: as big as possible without exceeding the (8-aligned) row count.
    tm = min(tile_m, _round_up(M, 8))
    # Hidden tile: bounds resident weight footprint to 2*E*tile_h per buffer.
    th = min(tile_h, H)
    if H % th != 0:
        # Zero-pad the hidden dim so every H tile is full:
        # gelu(x @ 0 + 0) == 0 and 0 @ W2_pad == 0, so padded tiles add exactly 0.
        Hp = _round_up(H, th)
        w1c = jnp.pad(w1c, ((0, 0), (0, Hp - H)))
        b1r = jnp.pad(b1r, ((0, 0), (0, Hp - H)))
        w2c = jnp.pad(w2c, ((0, Hp - H), (0, 0)))
        H = Hp

    grid = (pl.cdiv(M, tm), H // th)

    cbytes = jnp.dtype(compute_dtype).itemsize
    cost = pl.CostEstimate(
        flops=4 * M * E * H,                      # two matmuls, 2*M*E*H each
        transcendentals=M * H,                    # erf
        bytes_accessed=(x2d.size + w1c.size + w2c.size) * cbytes
        + (b1r.size + b2r.size) * 4
        + M * E * jnp.dtype(out_dtype).itemsize,
    )

    out2d = pl.pallas_call(
        _mlp_kernel,
        out_shape=jax.ShapeDtypeStruct((M, E), out_dtype),
        grid_spec=pltpu.PrefetchScalarGridSpec(
            num_scalar_prefetch=0,
            grid=grid,
            in_specs=[
                pl.BlockSpec((tm, E), lambda i, h: (i, 0)),   # x rows (const over H)
                pl.BlockSpec((E, th), lambda i, h: (0, h)),   # W1 hidden tile
                pl.BlockSpec((1, th), lambda i, h: (0, h)),   # b1 hidden tile
                pl.BlockSpec((th, E), lambda i, h: (h, 0)),   # W2 hidden tile
                pl.BlockSpec((1, E), lambda i, h: (0, 0)),    # b2 (const)
            ],
            out_specs=pl.BlockSpec((tm, E), lambda i, h: (i, 0)),
            scratch_shapes=[pltpu.VMEM((tm, E), jnp.float32)],
        ),
        compiler_params=pltpu.CompilerParams(
            dimension_semantics=("parallel", "arbitrary"),
            vmem_limit_bytes=64 * 1024 * 1024,
        ),
        cost_estimate=cost,
    )(x2d, w1c, b1r, w2c, b2r)

    return out2d.reshape(B, T, E)


def init_params(key, io_dim, hidden_ratio):
    """Deterministic init mirroring nn.Linear's U(-1/sqrt(fan_in), 1/sqrt(fan_in))."""
    hidden = int(io_dim * hidden_ratio)
    k1, k2, k3, k4 = jax.random.split(key, 4)
    lim1 = 1.0 / jnp.sqrt(io_dim)
    lim2 = 1.0 / jnp.sqrt(hidden)
    # Stored as (in_dim, out_dim) so the kernel does x @ W (== torch x @ W.T).
    w1 = jax.random.uniform(k1, (io_dim, hidden), jnp.float32, -lim1, lim1)
    b1 = jax.random.uniform(k2, (hidden,), jnp.float32, -lim1, lim1)
    w2 = jax.random.uniform(k3, (hidden, io_dim), jnp.float32, -lim2, lim2)
    b2 = jax.random.uniform(k4, (io_dim,), jnp.float32, -lim2, lim2)
    return w1, b1, w2, b2


def mlp_reference(x, w1, b1, w2, b2):
    h = jnp.dot(x, w1) + b1
    h = jax.nn.gelu(h, approximate=False)
    return jnp.dot(h, w2) + b2


if __name__ == "__main__":
    io_dim = 128          # lane-dense (multiple of 128)
    hidden_ratio = 4.0    # hidden = 512
    B, T = 2, 56          # M = 112 (not a tile multiple -> exercises masked row writes)

    key = jax.random.PRNGKey(0)
    kx, kp = jax.random.split(key)
    x = jax.random.normal(kx, (B, T, io_dim), jnp.float32)
    w1, b1, w2, b2 = init_params(kp, io_dim, hidden_ratio)

    ref = mlp_reference(x, w1, b1, w2, b2)

    # Small tiles here only to exercise both grid axes (M tiling + H accumulation)
    # at toy shapes; production defaults are tile_m=256, tile_h=512.
    out_bf16 = mlp_forward(x, w1, b1, w2, b2, tile_m=64, tile_h=256,
                           compute_dtype=jnp.bfloat16)
    out_bf16 = jax.block_until_ready(out_bf16)
    assert out_bf16.shape == (B, T, io_dim)
    assert jnp.allclose(out_bf16, ref, atol=5e-2, rtol=5e-2), "bf16 mismatch vs reference"

    # f32 compute path for a tighter structural check.
    out_f32 = mlp_forward(x, w1, b1, w2, b2, tile_m=64, tile_h=256,
                          compute_dtype=jnp.float32)
    out_f32 = jax.block_until_ready(out_f32)
    assert jnp.allclose(out_f32, ref, atol=1e-3, rtol=1e-3), "f32 mismatch vs reference"

    print("KERNEL_OK")
</pallas_src>

<mosaic_0001>
module attributes {stable_mosaic.version = 11 : i64} {
  func.func @_mlp_kernel(%arg0: i32, %arg1: i32, %arg2: memref<64x128xbf16, #tpu.memory_space<vmem>>, %arg3: memref<128x256xbf16, #tpu.memory_space<vmem>>, %arg4: memref<1x256xf32, #tpu.memory_space<vmem>>, %arg5: memref<256x128xbf16, #tpu.memory_space<vmem>>, %arg6: memref<1x128xf32, #tpu.memory_space<vmem>>, %arg7: memref<64x128xf32, #tpu.memory_space<vmem>>, %arg8: memref<64x128xf32, #tpu.memory_space<vmem>>) attributes {dimension_semantics = [#tpu.dimension_semantics<parallel>, #tpu.dimension_semantics<arbitrary>], iteration_bounds = array<i64: 2, 2>, scalar_prefetch = 0 : i64, scratch_operands = 1 : i64, tpu.core_type = #tpu.core_type<tc>, window_params = [{transform_indices = @transform_0, window_bounds = array<i64: 64, 128>}, {transform_indices = @transform_1, window_bounds = array<i64: 128, 256>}, {transform_indices = @transform_2, window_bounds = array<i64: 1, 256>}, {transform_indices = @transform_3, window_bounds = array<i64: 256, 128>}, {pipeline_mode = #tpu.pipeline_mode<synchronous>, transform_indices = @transform_4, window_bounds = array<i64: 1, 128>}, {transform_indices = @transform_5, window_bounds = array<i64: 64, 128>}]} {
    %c0_i32 = arith.constant 0 : i32
    %0 = arith.cmpi eq, %arg1, %c0_i32 : i32
    %1 = arith.extui %0 : i1 to i32
    %c0_i32_0 = arith.constant 0 : i32
    %2 = arith.cmpi ne, %1, %c0_i32_0 : i32
    scf.if %2 {
      %cst_17 = arith.constant 0.000000e+00 : f32
      %26 = vector.broadcast %cst_17 : f32 to vector<64x128xf32>
      %c0_18 = arith.constant 0 : index
      %c0_19 = arith.constant 0 : index
      %27 = vector.load %arg8[%c0_18, %c0_19] : memref<64x128xf32, #tpu.memory_space<vmem>>, vector<64x128xf32>
      tpu.vector_store %arg8[%c0_18, %c0_19], %26 {strides = array<i32>} : memref<64x128xf32, #tpu.memory_space<vmem>>, vector<64x128xf32>,
    } else {
    }
    %c0 = arith.constant 0 : index
    %c0_1 = arith.constant 0 : index
    %3 = vector.load %arg2[%c0, %c0_1] : memref<64x128xbf16, #tpu.memory_space<vmem>>, vector<64x128xbf16>
    %c0_2 = arith.constant 0 : index
    %c0_3 = arith.constant 0 : index
    %4 = vector.load %arg3[%c0_2, %c0_3] : memref<128x256xbf16, #tpu.memory_space<vmem>>, vector<128x256xbf16>
    %cst = arith.constant dense<0.000000e+00> : vector<64x256xf32>
    %5 = tpu.matmul %3, %4, %cst {dimension_numbers = #tpu.dot_dimension_numbers<[1], [0], [0], [1], [0, 0, 1, 1], [], []>} : vector<64x128xbf16>, vector<128x256xbf16>, vector<64x256xf32> -> vector<64x256xf32>
    %c0_4 = arith.constant 0 : index
    %c0_5 = arith.constant 0 : index
    %6 = vector.load %arg4[%c0_4, %c0_5] : memref<1x256xf32, #tpu.memory_space<vmem>>, vector<1x256xf32>
    %7 = vector.broadcast %6 : vector<1x256xf32> to vector<64x256xf32>
    %8 = arith.addf %5, %7 : vector<64x256xf32>
    %cst_6 = arith.constant 5.000000e-01 : f32
    %9 = vector.broadcast %cst_6 : f32 to vector<64x256xf32>
    %10 = arith.mulf %9, %8 : vector<64x256xf32>
    %cst_7 = arith.constant 0.707106769 : f32
    %11 = vector.broadcast %cst_7 : f32 to vector<64x256xf32>
    %12 = arith.mulf %8, %11 : vector<64x256xf32>
    %13 = math.erf %12 : vector<64x256xf32>
    %cst_8 = arith.constant 1.000000e+00 : f32
    %14 = vector.broadcast %cst_8 : f32 to vector<64x256xf32>
    %15 = arith.addf %14, %13 : vector<64x256xf32>
    %16 = arith.mulf %10, %15 : vector<64x256xf32>
    %c0_9 = arith.constant 0 : index
    %c0_10 = arith.constant 0 : index
    %17 = vector.load %arg8[%c0_9, %c0_10] : memref<64x128xf32, #tpu.memory_space<vmem>>, vector<64x128xf32>
    %18 = arith.truncf %16 : vector<64x256xf32> to vector<64x256xbf16>
    %c0_11 = arith.constant 0 : index
    %c0_12 = arith.constant 0 : index
    %19 = vector.load %arg5[%c0_11, %c0_12] : memref<256x128xbf16, #tpu.memory_space<vmem>>, vector<256x128xbf16>
    %cst_13 = arith.constant dense<0.000000e+00> : vector<64x128xf32>
    %20 = tpu.matmul %18, %19, %cst_13 {dimension_numbers = #tpu.dot_dimension_numbers<[1], [0], [0], [1], [0, 0, 1, 1], [], []>} : vector<64x256xbf16>, vector<256x128xbf16>, vector<64x128xf32> -> vector<64x128xf32>
    %21 = arith.addf %17, %20 : vector<64x128xf32>
    %c0_14 = arith.constant 0 : index
    %c0_15 = arith.constant 0 : index
    %22 = vector.load %arg8[%c0_14, %c0_15] : memref<64x128xf32, #tpu.memory_space<vmem>>, vector<64x128xf32>
    tpu.vector_store %arg8[%c0_14, %c0_15], %21 {strides = array<i32>} : memref<64x128xf32, #tpu.memory_space<vmem>>, vector<64x128xf32>,
    %c1_i32 = arith.constant 1 : i32
    %23 = arith.cmpi eq, %arg1, %c1_i32 : i32
    %24 = arith.extui %23 : i1 to i32
    %c0_i32_16 = arith.constant 0 : i32
    %25 = arith.cmpi ne, %24, %c0_i32_16 : i32
    scf.if %25 {
      %c0_17 = arith.constant 0 : index
      %c0_18 = arith.constant 0 : index
      %26 = vector.load %arg8[%c0_17, %c0_18] : memref<64x128xf32, #tpu.memory_space<vmem>>, vector<64x128xf32>
      %c0_19 = arith.constant 0 : index
      %c0_20 = arith.constant 0 : index
      %27 = vector.load %arg6[%c0_19, %c0_20] : memref<1x128xf32, #tpu.memory_space<vmem>>, vector<1x128xf32>
      %28 = vector.broadcast %27 : vector<1x128xf32> to vector<64x128xf32>
      %29 = arith.addf %26, %28 : vector<64x128xf32>
      %c0_21 = arith.constant 0 : index
      %c0_22 = arith.constant 0 : index
      %30 = vector.load %arg7[%c0_21, %c0_22] : memref<64x128xf32, #tpu.memory_space<vmem>>, vector<64x128xf32>
      tpu.vector_store %arg7[%c0_21, %c0_22], %29 {strides = array<i32>} : memref<64x128xf32, #tpu.memory_space<vmem>>, vector<64x128xf32>,
    } else {
    }
    return
  }
  func.func @transform_0(%arg0: i32, %arg1: i32) -> (i32, i32) {
    %c0_i32 = arith.constant 0 : i32
    %c0_i32_0 = arith.constant 0 : i32
    return %arg0, %c0_i32 : i32, i32
  }
  func.func @transform_1(%arg0: i32, %arg1: i32) -> (i32, i32) {
    %c0_i32 = arith.constant 0 : i32
    %c0_i32_0 = arith.constant 0 : i32
    return %c0_i32, %arg1 : i32, i32
  }
  func.func @transform_2(%arg0: i32, %arg1: i32) -> (i32, i32) {
    %c0_i32 = arith.constant 0 : i32
    %c0_i32_0 = arith.constant 0 : i32
    return %c0_i32, %arg1 : i32, i32
  }
  func.func @transform_3(%arg0: i32, %arg1: i32) -> (i32, i32) {
    %c0_i32 = arith.constant 0 : i32
    %c0_i32_0 = arith.constant 0 : i32
    return %arg1, %c0_i32 : i32, i32
  }
  func.func @transform_4(%arg0: i32, %arg1: i32) -> (i32, i32) {
    %c0_i32 = arith.constant 0 : i32
    %c0_i32_0 = arith.constant 0 : i32
    %c0_i32_1 = arith.constant 0 : i32
    return %c0_i32, %c0_i32_0 : i32, i32
  }
  func.func @transform_5(%arg0: i32, %arg1: i32) -> (i32, i32) {
    %c0_i32 = arith.constant 0 : i32
    %c0_i32_0 = arith.constant 0 : i32
    return %arg0, %c0_i32 : i32, i32
  }
}

</mosaic_0001>

<llo_original>
// kernel: mlp_forward.1
$region0: #{mlp_forward.1}
  #allocation0 [shape = 'u32[]', space=smem, size = 0x4, offset = 0x4, fixed_abs, tag = 'smem constant byte address 0x4 - core index']
  #allocation1 [shape = 'u32[144,128]{1,0:T(1,128)}', space=vmem, size = 0x12000, scoped, tag = 'internal scratch']
  #allocation2 [shape = 'f32[64,128]{1,0:T(8,128)}', space=vmem, size = 0x8000, scoped, tag = 'scratch operand']
  %s0 = inlined_call_operand.hbm [shape: bf16[112,128], index: 0, kind: input, shape index: {}]
  %s1 = inlined_call_operand.hbm [shape: bf16[128,512], index: 1, kind: input, shape index: {}]
  %s2 = inlined_call_operand.hbm [shape: f32[1,512], index: 2, kind: input, shape index: {}]
  %s3 = inlined_call_operand.hbm [shape: bf16[512,128], index: 3, kind: input, shape index: {}]
  %s4 = inlined_call_operand.hbm [shape: f32[1,128], index: 4, kind: input, shape index: {}]
  %s5 = inlined_call_operand.hbm [shape: f32[112,128], index: 5, kind: output, shape index: {}]
  %s6 = sld [smem:[#allocation0]]
  $region81: #{mlp_forward.1} parent=0
    _
  %s8 = ssub.s32 1, %s6
  %s9 = scalar_select 0, %s8, %s6
  $region1: #{mlp_forward.1} parent=0
    #allocation3 [shape = 'u8[32768]{0}', space=vmem, size = 0x8000, scoped, tag = 'input window, operand 0']
    #allocation4 [shape = 's32[2]{0}', space=sflag, size = 0x8, scoped, tag = 'scoped memory for mlp_forward.1']
    #allocation5 [shape = 's32[2]{0}', space=sflag, size = 0x8, scoped, tag = 'scoped memory for mlp_forward.1']
    #allocation6 [shape = 'u8[131072]{0}', space=vmem, size = 0x20000, scoped, tag = 'input window, operand 1']
    #allocation7 [shape = 's32[2]{0}', space=sflag, size = 0x8, scoped, tag = 'scoped memory for mlp_forward.1']
    #allocation8 [shape = 'u8[2048]{0}', space=vmem, size = 0x800, scoped, tag = 'input window, operand 2']
    #allocation9 [shape = 'u8[131072]{0}', space=vmem, size = 0x20000, scoped, tag = 'input window, operand 3']
    #allocation10 [shape = 's32[2]{0}', space=sflag, size = 0x8, scoped, tag = 'scoped memory for mlp_forward.1']
    #allocation11 [shape = 'u8[512]{0}', space=vmem, size = 0x400, scoped, tag = 'input window, operand 4, single buffered']
    #allocation12 [shape = 'u8[65536]{0}', space=vmem, size = 0x10000, scoped, tag = 'output window, operand 0']
    %10 = vsyncpa [#allocation4], 0
    %s11 = scalar_lea.sflag [#allocation4], 1
    %12 = vsyncpa %s11, 0
    %13 = vsyncpa [#allocation7], 0
    %s14 = scalar_lea.sflag [#allocation7], 1
    %15 = vsyncpa %s14, 0
    %16 = vsyncpa [#allocation10], 0
    %s17 = scalar_lea.sflag [#allocation10], 1
    %18 = vsyncpa %s17, 0
    %19 = vsyncpa [#allocation5], 0
    %s20 = scalar_lea.sflag [#allocation5], 1
    %21 = vsyncpa %s20, 0
    loop: start=0, step=1, limit=6
    $region2: #{mlp_forward.1} parent=1 // loop_pre_header
      _
    $region3: #{mlp_forward.1} parent=1 // loop_header
      %s23 = sphi 0, %s27
      %p24 = scmp.ge.s32.totalorder %s23, 6
      %s30 = sphi 0, %s42
      %s31 = sphi 0, %s38
      %s32 = sphi 0, %s30
      %s33 = sphi 0, %s31
      %s34 = sphi 0, %s32
      %s35 = sphi 0, %s33
      %s45 = sphi 0, %s47
      %s48 = sphi 0, %s45
      %s49 = sphi 0, %s48
      %s65 = sphi 0, %s49
      %s71 = sphi 0, %s73
      %s74 = sphi 0, %s71
      %s75 = sphi 0, %s74
      %s91 = sphi 0, %s75
      %s97 = sphi 0, %s99
      %s100 = sphi 0, %s97
      %s101 = sphi 0, %s100
      %s117 = sphi 0, %s101
      %s123 = sphi 0, %s125
      %s126 = sphi 0, %s123
      %s127 = sphi 0, %s126
      %s143 = sphi 0, %s127
      %s147 = sphi 0, %s147
      %s149 = sphi 0, %s147
      %s150 = sphi 0, %s149
      %s164 = sphi 0, %s150
      %s170 = sphi 0, %s172
      %s173 = sphi 0, %s170
      %s174 = sphi 0, %s173
      %s190 = sphi 0, %s174
    $region4: #{mlp_forward.1} parent=1 // loop_header_branch
      %26 = sbr.rel (%p24) target = $region8
    $region5: #{mlp_forward.1} parent=1 // loop_body
      %s28 = ssub.s32 %s23, 1
      %s29 = ssub.s32 %s23, 2
      %s36 = sadd.s32 1, %s31
      %p37 = scmp.ge.s32.totalorder %s36, 2
      %s38 = scalar_select %p37, 0, %s36
      %s39 = sadd.s32 1, %s30
      %s40 = scalar_select %p37, %s39, %s30
      %p41 = scmp.ge.s32.totalorder %s40, 2
      %s42 = scalar_select %p41, 0, %s40
      %s43 = ssub.s32 %s30, %s42
      %p44 = scmp.eq.s32.totalorder %s43, 0
      %s46 = sadd.s32 %s45, 1
      %s47 = scalar_select %p44, %s45, %s46
      %p50 = pneg %p44
      %p51 = scmp.eq.s32.totalorder %s23, 3
      %p52 = por %p50, %p51
      %p53 = scmp.ne.s32.totalorder %s45, %s48
      %p54 = scmp.eq.s32.totalorder %s23, 0
      %p55 = por %p53, %p54
      %p56 = scmp.ne.s32.totalorder %s45, %s48
      %p57 = scmp.eq.s32.totalorder %s28, 3
      %p58 = por %p56, %p57
      %p59 = scmp.ne.s32.totalorder %s48, %s49
      %p60 = scmp.eq.s32.totalorder %s28, 0
      %p61 = por %p59, %p60
      %p62 = scmp.ne.s32.totalorder %s48, %s49
      %p63 = scmp.eq.s32.totalorder %s29, 3
      %p64 = por %p62, %p63
      %p66 = scmp.ne.s32.totalorder %s49, %s65
      %p67 = scmp.eq.s32.totalorder %s29, 0
      %p68 = por %p66, %p67
      %s69 = ssub.s32 %s31, %s38
      %p70 = scmp.eq.s32.totalorder %s69, 0
      %s72 = sadd.s32 %s71, 1
      %s73 = scalar_select %p70, %s71, %s72
      %p76 = pneg %p70
      %p77 = scmp.eq.s32.totalorder %s23, 3
      %p78 = por %p76, %p77
      %p79 = scmp.ne.s32.totalorder %s71, %s74
      %p80 = scmp.eq.s32.totalorder %s23, 0
      %p81 = por %p79, %p80
      %p82 = scmp.ne.s32.totalorder %s71, %s74
      %p83 = scmp.eq.s32.totalorder %s28, 3
      %p84 = por %p82, %p83
      %p85 = scmp.ne.s32.totalorder %s74, %s75
      %p86 = scmp.eq.s32.totalorder %s28, 0
      %p87 = por %p85, %p86
      %p88 = scmp.ne.s32.totalorder %s74, %s75
      %p89 = scmp.eq.s32.totalorder %s29, 3
      %p90 = por %p88, %p89
      %p92 = scmp.ne.s32.totalorder %s75, %s91
      %p93 = scmp.eq.s32.totalorder %s29, 0
      %p94 = por %p92, %p93
      %s95 = ssub.s32 %s31, %s38
      %p96 = scmp.eq.s32.totalorder %s95, 0
      %s98 = sadd.s32 %s97, 1
      %s99 = scalar_select %p96, %s97, %s98
      %p102 = pneg %p96
      %p103 = scmp.eq.s32.totalorder %s23, 3
      %p104 = por %p102, %p103
      %p105 = scmp.ne.s32.totalorder %s97, %s100
      %p106 = scmp.eq.s32.totalorder %s23, 0
      %p107 = por %p105, %p106
      %p108 = scmp.ne.s32.totalorder %s97, %s100
      %p109 = scmp.eq.s32.totalorder %s28, 3
      %p110 = por %p108, %p109
      %p111 = scmp.ne.s32.totalorder %s100, %s101
      %p112 = scmp.eq.s32.totalorder %s28, 0
      %p113 = por %p111, %p112
      %p114 = scmp.ne.s32.totalorder %s100, %s101
      %p115 = scmp.eq.s32.totalorder %s29, 3
      %p116 = por %p114, %p115
      %p118 = scmp.ne.s32.totalorder %s101, %s117
      %p119 = scmp.eq.s32.totalorder %s29, 0
      %p120 = por %p118, %p119
      %s121 = ssub.s32 %s31, %s38
      %p122 = scmp.eq.s32.totalorder %s121, 0
      %s124 = sadd.s32 %s123, 1
      %s125 = scalar_select %p122, %s123, %s124
      %p128 = pneg %p122
      %p129 = scmp.eq.s32.totalorder %s23, 3
      %p130 = por %p128, %p129
      %p131 = scmp.ne.s32.totalorder %s123, %s126
      %p132 = scmp.eq.s32.totalorder %s23, 0
      %p133 = por %p131, %p132
      %p134 = scmp.ne.s32.totalorder %s123, %s126
      %p135 = scmp.eq.s32.totalorder %s28, 3
      %p136 = por %p134, %p135
      %p137 = scmp.ne.s32.totalorder %s126, %s127
      %p138 = scmp.eq.s32.totalorder %s28, 0
      %p139 = por %p137, %p138
      %p140 = scmp.ne.s32.totalorder %s126, %s127
      %p141 = scmp.eq.s32.totalorder %s29, 3
      %p142 = por %p140, %p141
      %p144 = scmp.ne.s32.totalorder %s127, %s143
      %p145 = scmp.eq.s32.totalorder %s29, 0
      %p146 = por %p144, %p145
      %s148 = sadd.s32 %s147, 1
      %p151 = scmp.eq.s32.totalorder %s23, 3
      %p152 = scmp.ne.s32.totalorder %s147, %s149
      %p153 = scmp.eq.s32.totalorder %s23, 0
      %p154 = por %p152, %p153
      %p155 = scmp.ne.s32.totalorder %s147, %s149
      %p156 = scmp.eq.s32.totalorder %s28, 3
      %p157 = por %p155, %p156
      %p158 = scmp.ne.s32.totalorder %s149, %s150
      %p159 = scmp.eq.s32.totalorder %s28, 0
      %p160 = por %p158, %p159
      %p161 = scmp.ne.s32.totalorder %s149, %s150
      %p162 = scmp.eq.s32.totalorder %s29, 3
      %p163 = por %p161, %p162
      %p165 = scmp.ne.s32.totalorder %s150, %s164
      %p166 = scmp.eq.s32.totalorder %s29, 0
      %p167 = por %p165, %p166
      %s168 = ssub.s32 %s30, %s42
      %p169 = scmp.eq.s32.totalorder %s168, 0
      %s171 = sadd.s32 %s170, 1
      %s172 = scalar_select %p169, %s170, %s171
      %p175 = pneg %p169
      %p176 = scmp.eq.s32.totalorder %s23, 3
      %p177 = por %p175, %p176
      %p178 = scmp.ne.s32.totalorder %s170, %s173
      %p179 = scmp.eq.s32.totalorder %s23, 0
      %p180 = por %p178, %p179
      %p181 = scmp.ne.s32.totalorder %s170, %s173
      %p182 = scmp.eq.s32.totalorder %s28, 3
      %p183 = por %p181, %p182
      %p184 = scmp.ne.s32.totalorder %s173, %s174
      %p185 = scmp.eq.s32.totalorder %s28, 0
      %p186 = por %p184, %p185
      %p187 = scmp.ne.s32.totalorder %s173, %s174
      %p188 = scmp.eq.s32.totalorder %s29, 3
      %p189 = por %p187, %p188
      %p191 = scmp.ne.s32.totalorder %s174, %s190
      %p192 = scmp.eq.s32.totalorder %s29, 0
      %p193 = por %p191, %p192
      %p194 = scmp.le.s32.totalorder 1, %s23
      %p195 = scmp.lt.s32.totalorder %s23, 5
      %p196 = pnand %p194, %p195
      %p197 = pneg %p196
      // Predicated region
      $region9: #{mlp_forward.1} parent=5 // pred_check
        _
      $region10: #{mlp_forward.1} parent=5 // pred_check_branch
        %199 = sbr.rel (%p196) target = $region12
      $region11: #{mlp_forward.1} parent=5 // pred_region
        %s200 = ssub.s32 %s23, 1
        // Predicated region
        $region13: #{mlp_forward.1} parent=11 // pred_check
          %p201 = pneg %p160
        $region14: #{mlp_forward.1} parent=11 // pred_check_branch
          %203 = sbr.rel (%p201) target = $region16
        $region15: #{mlp_forward.1} parent=11 // pred_region
          %s205 = ssub.s32 16, 16
          %206 = vsyncadd [#allocation10], %s205
          %s208 = sshll.u32 [#allocation11], 4
          %s209 = int_to_ptr.vmem [resolvable:$true] %s208
          %211 = dma.hbm_to_vmem [thread:$0]  %s4, 16, %s209, [#allocation10]
        $region16: #{mlp_forward.1} parent=11 // pred_fallthru
          _
      $region12: #{mlp_forward.1} parent=5 // pred_fallthru
        _
      %p212 = scmp.lt.s32.totalorder %s23, 4
      // Predicated region
      $region17: #{mlp_forward.1} parent=5 // pred_check
        %p213 = pneg %p212
      $region18: #{mlp_forward.1} parent=5 // pred_check_branch
        %215 = sbr.rel (%p213) target = $region20
      $region19: #{mlp_forward.1} parent=5 // pred_region
        // Predicated region
        $region21: #{mlp_forward.1} parent=19 // pred_check
          %p216 = pneg %p55
        $region22: #{mlp_forward.1} parent=19 // pred_check_branch
          %218 = sbr.rel (%p216) target = $region24
        $region23: #{mlp_forward.1} parent=19 // pred_region
          %s219 = sand.u32 %s45, 1
          %s220 = scalar_lea.sflag [#allocation4], %s219
          %s221 = sand.u32 %s45, 1
          %s222 = smul.addr %s221, 32
          %s223 = scalar_lea.vmem [#allocation3], %s222
          %s224 = smul.u32 8, %s30
          %s225 = ssub.s32 14, %s224
          %p226 = scmp.lt.s32.totalorder %s225, 8
          %s227 = scalar_select %p226, %s225, 8
          %s228 = smul.u32 64, %s227
          %s230 = ssub.s32 512, %s228
          %231 = vsyncadd %s220, %s230
          %p232 = scmp.ne.s32.totalorder 0, %s228
          %s233 = smul.addr %s224, 64
          %s234 = scalar_lea.hbm %s0, %s233
          %s235 = smul.u32 4, %s227
          %s236 = sshll.u32 %s223, 4
          %s237 = int_to_ptr.vmem [resolvable:$true] %s236
          %s238 = sshll.u32 %s235, 4
          %242 = dma.hbm_to_vmem [thread:$0]  (%p232), %s234, %s238, %s237, %s220, 64, 64, 4
        $region24: #{mlp_forward.1} parent=19 // pred_fallthru
          _
        // Predicated region
        $region25: #{mlp_forward.1} parent=19 // pred_check
          %p243 = pneg %p81
        $region26: #{mlp_forward.1} parent=19 // pred_check_branch
          %245 = sbr.rel (%p243) target = $region28
        $region27: #{mlp_forward.1} parent=19 // pred_region
          %s246 = sand.u32 %s23, 1
          %s247 = scalar_lea.sflag [#allocation7], %s246
          %s248 = sand.u32 %s71, 1
          %s249 = smul.addr %s248, 128
          %s250 = scalar_lea.vmem [#allocation6], %s249
          %s251 = smul.u32 2, %s31
          %s253 = ssub.s32 2048, 2048
          %254 = vsyncadd %s247, %s253
          %s255 = smul.addr %s251, 64
          %s256 = scalar_lea.hbm %s1, %s255
          %s257 = sshll.u32 %s250, 4
          %s258 = int_to_ptr.vmem [resolvable:$true] %s257
          %263 = dma.hbm_to_vmem [thread:$0]  %s256, 2048, %s258, %s247, 256, 128, 8
        $region28: #{mlp_forward.1} parent=19 // pred_fallthru
          _
        // Predicated region
        $region29: #{mlp_forward.1} parent=19 // pred_check
          %p264 = pneg %p107
        $region30: #{mlp_forward.1} parent=19 // pred_check_branch
          %266 = sbr.rel (%p264) target = $region32
        $region31: #{mlp_forward.1} parent=19 // pred_region
          %s267 = sand.u32 %s23, 1
          %s268 = scalar_lea.sflag [#allocation7], %s267
          %s269 = sand.u32 %s97, 1
          %s270 = smul.addr %s269, 2
          %s271 = scalar_lea.vmem [#allocation8], %s270
          %s272 = smul.u32 2, %s31
          %s274 = ssub.s32 32, 32
          %275 = vsyncadd %s268, %s274
          %s276 = smul.addr %s272, 16
          %s277 = scalar_lea.hbm %s2, %s276
          %s279 = sshll.u32 %s271, 4
          %s280 = int_to_ptr.vmem [resolvable:$true] %s279
          %282 = dma.hbm_to_vmem [thread:$0]  %s277, 32, %s280, %s268
        $region32: #{mlp_forward.1} parent=19 // pred_fallthru
          _
        // Predicated region
        $region33: #{mlp_forward.1} parent=19 // pred_check
          %p283 = pneg %p133
        $region34: #{mlp_forward.1} parent=19 // pred_check_branch
          %285 = sbr.rel (%p283) target = $region36
        $region35: #{mlp_forward.1} parent=19 // pred_region
          %s286 = sand.u32 %s23, 1
          %s287 = scalar_lea.sflag [#allocation10], %s286
          %s288 = sand.u32 %s123, 1
          %s289 = smul.addr %s288, 128
          %s290 = scalar_lea.vmem [#allocation9], %s289
          %s291 = smul.u32 32, %s31
          %s293 = ssub.s32 2048, 2048
          %294 = vsyncadd %s287, %s293
          %s295 = smul.addr %s291, 64
          %s296 = scalar_lea.hbm %s3, %s295
          %s297 = sshll.u32 %s290, 4
          %s298 = int_to_ptr.vmem [resolvable:$true] %s297
          %303 = dma.hbm_to_vmem [thread:$0]  %s296, 2048, %s298, %s287, 64, 64, 4
        $region36: #{mlp_forward.1} parent=19 // pred_fallthru
          _
      $region20: #{mlp_forward.1} parent=5 // pred_fallthru
        _
      %p304 = scmp.le.s32.totalorder 1, %s23
      %p305 = scmp.lt.s32.totalorder %s23, 5
      %p306 = pnand %p304, %p305
      %p307 = pneg %p306
      // Predicated region
      $region37: #{mlp_forward.1} parent=5 // pred_check
        _
      $region38: #{mlp_forward.1} parent=5 // pred_check_branch
        %309 = sbr.rel (%p306) target = $region40
      $region39: #{mlp_forward.1} parent=5 // pred_region
        %s310 = ssub.s32 %s23, 1
        %s311 = sand.u32 %s48, 1
        %s312 = scalar_lea.sflag [#allocation4], %s311
        %s313 = sand.u32 %s48, 1
        %s314 = smul.addr %s313, 32
        %s315 = scalar_lea.vmem [#allocation3], %s314
        // Predicated region
        $region41: #{mlp_forward.1} parent=39 // pred_check
          %p316 = pneg %p61
        $region42: #{mlp_forward.1} parent=39 // pred_check_branch
          %318 = sbr.rel (%p316) target = $region44
        $region43: #{mlp_forward.1} parent=39 // pred_region
          %319 = dma.done %s312, 512
        $region44: #{mlp_forward.1} parent=39 // pred_fallthru
          _
        %s320 = sand.u32 %s28, 1
        %s321 = scalar_lea.sflag [#allocation7], %s320
        %s322 = sand.u32 %s74, 1
        %s323 = smul.addr %s322, 128
        %s324 = scalar_lea.vmem [#allocation6], %s323
        // Predicated region
        $region45: #{mlp_forward.1} parent=39 // pred_check
          %p325 = pneg %p87
        $region46: #{mlp_forward.1} parent=39 // pred_check_branch
          %327 = sbr.rel (%p325) target = $region48
        $region47: #{mlp_forward.1} parent=39 // pred_region
          %328 = dma.done %s321, 2048
        $region48: #{mlp_forward.1} parent=39 // pred_fallthru
          _
        %s329 = sand.u32 %s28, 1
        %s330 = scalar_lea.sflag [#allocation7], %s329
        %s331 = sand.u32 %s100, 1
        %s332 = smul.addr %s331, 2
        %s333 = scalar_lea.vmem [#allocation8], %s332
        // Predicated region
        $region49: #{mlp_forward.1} parent=39 // pred_check
          %p334 = pneg %p113
        $region50: #{mlp_forward.1} parent=39 // pred_check_branch
          %336 = sbr.rel (%p334) target = $region52
        $region51: #{mlp_forward.1} parent=39 // pred_region
          %337 = dma.done %s330, 32
        $region52: #{mlp_forward.1} parent=39 // pred_fallthru
          _
        %s338 = sand.u32 %s28, 1
        %s339 = scalar_lea.sflag [#allocation10], %s338
        %s340 = sand.u32 %s126, 1
        %s341 = smul.addr %s340, 128
        %s342 = scalar_lea.vmem [#allocation9], %s341
        // Predicated region
        $region53: #{mlp_forward.1} parent=39 // pred_check
          %p343 = pneg %p139
        $region54: #{mlp_forward.1} parent=39 // pred_check_branch
          %345 = sbr.rel (%p343) target = $region56
        $region55: #{mlp_forward.1} parent=39 // pred_region
          %346 = dma.done %s339, 2048
        $region56: #{mlp_forward.1} parent=39 // pred_fallthru
          _
        // Predicated region
        $region57: #{mlp_forward.1} parent=39 // pred_check
          %p347 = pneg %p160
        $region58: #{mlp_forward.1} parent=39 // pred_check_branch
          %349 = sbr.rel (%p347) target = $region60
        $region59: #{mlp_forward.1} parent=39 // pred_region
          %350 = dma.done [#allocation10], 16
        $region60: #{mlp_forward.1} parent=39 // pred_fallthru
          _
        %s351 = sand.u32 %s48, 1
        %s352 = scalar_lea.sflag [#allocation4], %s351
        %s353 = sand.u32 %s48, 1
        %s354 = smul.addr %s353, 32
        %s355 = scalar_lea.vmem [#allocation3], %s354
        %p356 = pneg %p61
        %p357 = pneg %p58
        %s358 = sand.u32 %s28, 1
        %s359 = scalar_lea.sflag [#allocation7], %s358
        %s360 = sand.u32 %s74, 1
        %s361 = smul.addr %s360, 128
        %s362 = scalar_lea.vmem [#allocation6], %s361
        %p363 = pneg %p87
        %p364 = pneg %p84
        %s365 = sand.u32 %s28, 1
        %s366 = scalar_lea.sflag [#allocation7], %s365
        %s367 = sand.u32 %s100, 1
        %s368 = smul.addr %s367, 2
        %s369 = scalar_lea.vmem [#allocation8], %s368
        %p370 = pneg %p113
        %p371 = pneg %p110
        %s372 = sand.u32 %s28, 1
        %s373 = scalar_lea.sflag [#allocation10], %s372
        %s374 = sand.u32 %s126, 1
        %s375 = smul.addr %s374, 128
        %s376 = scalar_lea.vmem [#allocation9], %s375
        %p377 = pneg %p139
        %p378 = pneg %p136
        %p379 = pneg %p160
        %p380 = pneg %p157
        %p381 = pneg %p186
        %p382 = pneg %p183
        %s383 = sand.u32 %s173, 1
        %s384 = scalar_lea.sflag [#allocation5], %s383
        %s385 = sand.u32 %s173, 1
        %s386 = smul.addr %s385, 64
        %s387 = scalar_lea.vmem [#allocation12], %s386
        %s388 = smul.u32 8, %s32
        %s389 = ssub.s32 14, %s388
        %p390 = scmp.lt.s32.totalorder %s389, 8
        %s391 = scalar_select %p390, %s389, 8
        %s392 = smul.u32 64, %s391
        %s393 = smul.u32 2, %s33
        %s394 = smul.u32 2, %s33
        %s395 = smul.u32 32, %s33
        %s396 = smul.u32 8, %s32
        %s397 = ssub.s32 14, %s396
        %p398 = scmp.lt.s32.totalorder %s397, 8
        %s399 = scalar_select %p398, %s397, 8
        %s400 = smul.u32 128, %s399
        %p402 = scmp.eq.s32.totalorder %s33, 0
        // Predicated region
        $region61: #{mlp_forward.1} parent=39 // pred_check
          %p403 = pneg %p402
        $region62: #{mlp_forward.1} parent=39 // pred_check_branch
          %405 = sbr.rel (%p403) target = $region64
        $region63: #{mlp_forward.1} parent=39 // pred_region
          %406 = vst [vmem:[#allocation2] sm:$0xff] 0.0
          %407 = vst [vmem:[#allocation2 + $0x8] sm:$0xff] 0.0
          %408 = vst [vmem:[#allocation2 + $0x10] sm:$0xff] 0.0
          %409 = vst [vmem:[#allocation2 + $0x18] sm:$0xff] 0.0
          %410 = vst [vmem:[#allocation2 + $0x20] sm:$0xff] 0.0
          %411 = vst [vmem:[#allocation2 + $0x28] sm:$0xff] 0.0
          %412 = vst [vmem:[#allocation2 + $0x30] sm:$0xff] 0.0
          %413 = vst [vmem:[#allocation2 + $0x38] sm:$0xff] 0.0
        $region64: #{mlp_forward.1} parent=39 // pred_fallthru
          _
        %v414 = vld [vmem:[%s315] sm:$0xf]
        %v415 = vld [vmem:[%s315 + $0x4] sm:$0xf]
        %v416 = vld [vmem:[%s315 + $0x8] sm:$0xf]
        %v417 = vld [vmem:[%s315 + $0xc] sm:$0xf]
        %v418 = vld [vmem:[%s315 + $0x10] sm:$0xf]
        %v419 = vld [vmem:[%s315 + $0x14] sm:$0xf]
        %v420 = vld [vmem:[%s315 + $0x18] sm:$0xf]
        %v421 = vld [vmem:[%s315 + $0x1c] sm:$0xf]
        %v422 = vld [vmem:[%s324] sm:$0xff]
        %v423 = vld [vmem:[%s324 + $0x8] sm:$0xff]
        %v424 = vld [vmem:[%s324 + $0x10] sm:$0xff]
        %v425 = vld [vmem:[%s324 + $0x18] sm:$0xff]
        %v426 = vld [vmem:[%s324 + $0x20] sm:$0xff]
        %v427 = vld [vmem:[%s324 + $0x28] sm:$0xff]
        %v428 = vld [vmem:[%s324 + $0x30] sm:$0xff]
        %v429 = vld [vmem:[%s324 + $0x38] sm:$0xff]
        %v430 = vld [vmem:[%s324 + $0x40] sm:$0xff]
        %v431 = vld [vmem:[%s324 + $0x48] sm:$0xff]
        %v432 = vld [vmem:[%s324 + $0x50] sm:$0xff]
        %v433 = vld [vmem:[%s324 + $0x58] sm:$0xff]
        %v434 = vld [vmem:[%s324 + $0x60] sm:$0xff]
        %v435 = vld [vmem:[%s324 + $0x68] sm:$0xff]
        %v436 = vld [vmem:[%s324 + $0x70] sm:$0xff]
        %v437 = vld [vmem:[%s324 + $0x78] sm:$0xff]
        %v438 = vld [vmem:[%s333] sm:$0x3]
        %v440 = vlaneseq
        %v441 = vshrl.u32 %v440, 7
        %v442 = vsub.s32 0, %v441
        %v443 = vrot.slane %v438, %v442
        %v444 = vlaneseq
        %v445 = vshrl.u32 %v444, 7
        %v446 = vsub.s32 1, %v445
        %v447 = vrot.slane %v438, %v446
        %v458 = vunpack.c.l.b16 %v414
        %v459 = vunpack.c.l.b16 %v415
        %v460 = vunpack.c.l.b16 %v416
        %v461 = vunpack.c.l.b16 %v417
        %v462 = vunpack.c.l.b16 %v418
        %v463 = vunpack.c.l.b16 %v419
        %v464 = vunpack.c.l.b16 %v420
        %v465 = vunpack.c.l.b16 %v421
        %v466 = vpack.c.b16 %v459, %v458
        %v467 = vpack.c.b16 %v461, %v460
        %v468 = vpack.c.b16 %v463, %v462
        %v469 = vpack.c.b16 %v465, %v464
        %v490 = vunpack.c.l.b16 %v422
        %v491 = vunpack.c.h.b16 %v422
        %v492 = vunpack.c.l.b16 %v423
        %v493 = vunpack.c.h.b16 %v423
        %v494 = vunpack.c.l.b16 %v424
        %v495 = vunpack.c.h.b16 %v424
        %v496 = vunpack.c.l.b16 %v425
        %v497 = vunpack.c.h.b16 %v425
        %v498 = vunpack.c.l.b16 %v426
        %v499 = vunpack.c.h.b16 %v426
        %v500 = vunpack.c.l.b16 %v427
        %v501 = vunpack.c.h.b16 %v427
        %v502 = vunpack.c.l.b16 %v428
        %v503 = vunpack.c.h.b16 %v428
        %v504 = vunpack.c.l.b16 %v429
        %v505 = vunpack.c.h.b16 %v429
        %v506 = vunpack.c.l.b16 %v430
        %v507 = vunpack.c.h.b16 %v430
        %v508 = vunpack.c.l.b16 %v431
        %v509 = vunpack.c.h.b16 %v431
        %v510 = vunpack.c.l.b16 %v432
        %v511 = vunpack.c.h.b16 %v432
        %v512 = vunpack.c.l.b16 %v433
        %v513 = vunpack.c.h.b16 %v433
        %v514 = vunpack.c.l.b16 %v434
        %v515 = vunpack.c.h.b16 %v434
        %v516 = vunpack.c.l.b16 %v435
        %v517 = vunpack.c.h.b16 %v435
        %v518 = vunpack.c.l.b16 %v436
        %v519 = vunpack.c.h.b16 %v436
        %v520 = vunpack.c.l.b16 %v437
        %v521 = vunpack.c.h.b16 %v437
        %v522 = vpack.c.b16 %v492, %v490
        %v523 = vpack.c.b16 %v493, %v491
        %v524 = vpack.c.b16 %v496, %v494
        %v525 = vpack.c.b16 %v497, %v495
        %v526 = vpack.c.b16 %v500, %v498
        %v527 = vpack.c.b16 %v501, %v499
        %v528 = vpack.c.b16 %v504, %v502
        %v529 = vpack.c.b16 %v505, %v503
        %v530 = vpack.c.b16 %v508, %v506
        %v531 = vpack.c.b16 %v509, %v507
        %v532 = vpack.c.b16 %v512, %v510
        %v533 = vpack.c.b16 %v513, %v511
        %v534 = vpack.c.b16 %v516, %v514
        %v535 = vpack.c.b16 %v517, %v515
        %v536 = vpack.c.b16 %v520, %v518
        %v537 = vpack.c.b16 %v521, %v519
        %554 = vmatprep.subr.bf16.mxu0 %v523
        %555 = vmatpush1.bf16.msra.mxu0 %v522
        %556 = vmatprep.subr.bf16.mxu0 %v525
        %557 = vmatpush1.bf16.msra.mxu0 %v524
        %558 = vmatprep.subr.bf16.mxu0 %v527
        %559 = vmatpush1.bf16.msra.mxu0 %v526
        %560 = vmatprep.subr.bf16.mxu0 %v529
        %561 = vmatpush1.bf16.msra.mxu0 %v528
        %562 = vmatprep.subr.bf16.mxu0 %v531
        %563 = vmatpush1.bf16.msra.mxu0 %v530
        %564 = vmatprep.subr.bf16.mxu0 %v533
        %565 = vmatpush1.bf16.msra.mxu0 %v532
        %566 = vmatprep.subr.bf16.mxu0 %v535
        %567 = vmatpush1.bf16.msra.mxu0 %v534
        %568 = vmatprep.subr.bf16.mxu0 %v537
        %569 = vmatpush1.bf16.msra.mxu0 %v536
        %570 = vmatprep.subr.bf16.mxu0 0
        %571 = vmatpush1.bf16.msra.mxu0 0
        %572 = vmatprep.subr.bf16.mxu0 0
        %573 = vmatpush1.bf16.msra.mxu0 0
        %574 = vmatprep.subr.bf16.mxu0 0
        %575 = vmatpush1.bf16.msra.mxu0 0
        %576 = vmatprep.subr.bf16.mxu0 0
        %577 = vmatpush1.bf16.msra.mxu0 0
        %578 = vmatprep.subr.bf16.mxu0 0
        %579 = vmatpush1.bf16.msra.mxu0 0
        %580 = vmatprep.subr.bf16.mxu0 0
        %581 = vmatpush1.bf16.msra.mxu0 0
        %582 = vmatprep.subr.bf16.mxu0 0
        %583 = vmatpush1.bf16.msra.mxu0 0
        %584 = vmatprep.subr.bf16.mxu0 0
        %585 = vmatpush1.bf16.msra.mxu0 0
        %586 = vmatprep.mubr.bf16.mxu0 0
        %587 = vmatmul.mubr.bf16.gmra.mrb[0].mxu0 %v466
        %v588 = vpop.f32.mrb[0].mxu0
        %v589 = vadd.f32 %v443, %v588
        %v590 = vpop.f32.mrb[0].mxu0
        %v591 = vadd.f32 %v447, %v590
        %v592 = vpop.f32.mrb[0].mxu0
        %v593 = vadd.f32 %v443, %v592
        %v594 = vpop.f32.mrb[0].mxu0
        %v595 = vadd.f32 %v447, %v594
        %596 = vmatprep.mubr.bf16.mxu0 0
        %597 = vmatmul.mubr.bf16.gmra.mrb[0].mxu0 %v467
        %v598 = vpop.f32.mrb[0].mxu0
        %v599 = vadd.f32 %v443, %v598
        %v600 = vpop.f32.mrb[0].mxu0
        %v601 = vadd.f32 %v447, %v600
        %v602 = vpop.f32.mrb[0].mxu0
        %v603 = vadd.f32 %v443, %v602
        %v604 = vpop.f32.mrb[0].mxu0
        %v605 = vadd.f32 %v447, %v604
        %606 = vmatprep.mubr.bf16.mxu0 0
        %607 = vmatmul.mubr.bf16.gmra.mrb[0].mxu0 %v468
        %v608 = vpop.f32.mrb[0].mxu0
        %v609 = vadd.f32 %v443, %v608
        %v610 = vpop.f32.mrb[0].mxu0
        %v611 = vadd.f32 %v447, %v610
        %v612 = vpop.f32.mrb[0].mxu0
        %v613 = vadd.f32 %v443, %v612
        %v614 = vpop.f32.mrb[0].mxu0
        %v615 = vadd.f32 %v447, %v614
        %616 = vmatprep.mubr.bf16.mxu0 0
        %617 = vmatmul.mubr.bf16.gmra.mrb[0].mxu0 %v469
        %v618 = vpop.f32.mrb[0].mxu0
        %v619 = vadd.f32 %v443, %v618
        %v620 = vpop.f32.mrb[0].mxu0
        %v621 = vadd.f32 %v447, %v620
        %v622 = vpop.f32.mrb[0].mxu0
        %v623 = vadd.f32 %v443, %v622
        %v624 = vpop.f32.mrb[0].mxu0
        %v625 = vadd.f32 %v447, %v624
        %626 = vdwg.mxu0
        %v627 = vmul.f32 %v589, 0.5
        %v628 = vmul.f32 %v591, 0.5
        %v629 = vmul.f32 %v593, 0.5
        %v630 = vmul.f32 %v595, 0.5
        %v631 = vmul.f32 %v599, 0.5
        %v632 = vmul.f32 %v601, 0.5
        %v633 = vmul.f32 %v603, 0.5
        %v634 = vmul.f32 %v605, 0.5
        %v635 = vmul.f32 %v609, 0.5
        %v636 = vmul.f32 %v611, 0.5
        %v637 = vmul.f32 %v613, 0.5
        %v638 = vmul.f32 %v615, 0.5
        %v639 = vmul.f32 %v619, 0.5
        %v640 = vmul.f32 %v621, 0.5
        %v641 = vmul.f32 %v623, 0.5
        %v642 = vmul.f32 %v625, 0.5
        %v643 = vmul.f32 %v589, 0.70710677
        %v644 = vmul.f32 %v591, 0.70710677
        %v645 = vmul.f32 %v593, 0.70710677
        %v646 = vmul.f32 %v595, 0.70710677
        %v647 = vmul.f32 %v599, 0.70710677
        %v648 = vmul.f32 %v601, 0.70710677
        %v649 = vmul.f32 %v603, 0.70710677
        %v650 = vmul.f32 %v605, 0.70710677
        %v651 = vmul.f32 %v609, 0.70710677
        %v652 = vmul.f32 %v611, 0.70710677
        %v653 = vmul.f32 %v613, 0.70710677
        %v654 = vmul.f32 %v615, 0.70710677
        %v655 = vmul.f32 %v619, 0.70710677
        %v656 = vmul.f32 %v621, 0.70710677
        %v657 = vmul.f32 %v623, 0.70710677
        %v658 = vmul.f32 %v625, 0.70710677
        %v659 = verf.f32.pop %v643
        %v660 = verf.f32.pop %v644
        %v661 = verf.f32.pop %v645
        %v662 = verf.f32.pop %v646
        %v663 = verf.f32.pop %v647
        %v664 = verf.f32.pop %v648
        %v665 = verf.f32.pop %v649
        %v666 = verf.f32.pop %v650
        %v667 = verf.f32.pop %v651
        %v668 = verf.f32.pop %v652
        %v669 = verf.f32.pop %v653
        %v670 = verf.f32.pop %v654
        %v671 = verf.f32.pop %v655
        %v672 = verf.f32.pop %v656
        %v673 = verf.f32.pop %v657
        %v674 = verf.f32.pop %v658
        %v675 = vadd.f32 %v659, 1.0
        %v676 = vadd.f32 %v660, 1.0
        %v677 = vadd.f32 %v661, 1.0
        %v678 = vadd.f32 %v662, 1.0
        %v679 = vadd.f32 %v663, 1.0
        %v680 = vadd.f32 %v664, 1.0
        %v681 = vadd.f32 %v665, 1.0
        %v682 = vadd.f32 %v666, 1.0
        %v683 = vadd.f32 %v667, 1.0
        %v684 = vadd.f32 %v668, 1.0
        %v685 = vadd.f32 %v669, 1.0
        %v686 = vadd.f32 %v670, 1.0
        %v687 = vadd.f32 %v671, 1.0
        %v688 = vadd.f32 %v672, 1.0
        %v689 = vadd.f32 %v673, 1.0
        %v690 = vadd.f32 %v674, 1.0
        %v691 = vmul.f32 %v627, %v675
        %v692 = vmul.f32 %v628, %v676
        %v693 = vmul.f32 %v629, %v677
        %v694 = vmul.f32 %v630, %v678
        %v695 = vmul.f32 %v631, %v679
        %v696 = vmul.f32 %v632, %v680
        %v697 = vmul.f32 %v633, %v681
        %v698 = vmul.f32 %v634, %v682
        %v699 = vmul.f32 %v635, %v683
        %v700 = vmul.f32 %v636, %v684
        %v701 = vmul.f32 %v637, %v685
        %v702 = vmul.f32 %v638, %v686
        %v703 = vmul.f32 %v639, %v687
        %v704 = vmul.f32 %v640, %v688
        %v705 = vmul.f32 %v641, %v689
        %v706 = vmul.f32 %v642, %v690
        %v707 = vld [vmem:[#allocation2] sm:$0xff]
        %v708 = vld [vmem:[#allocation2 + $0x8] sm:$0xff]
        %v709 = vld [vmem:[#allocation2 + $0x10] sm:$0xff]
        %v710 = vld [vmem:[#allocation2 + $0x18] sm:$0xff]
        %v711 = vld [vmem:[#allocation2 + $0x20] sm:$0xff]
        %v712 = vld [vmem:[#allocation2 + $0x28] sm:$0xff]
        %v713 = vld [vmem:[#allocation2 + $0x30] sm:$0xff]
        %v714 = vld [vmem:[#allocation2 + $0x38] sm:$0xff]
        %v715 = vpack.c.bf16 %v693, %v691
        %v716 = vpack.c.bf16 %v694, %v692
        %v717 = vpack.c.bf16 %v697, %v695
        %v718 = vpack.c.bf16 %v698, %v696
        %v719 = vpack.c.bf16 %v701, %v699
        %v720 = vpack.c.bf16 %v702, %v700
        %v721 = vpack.c.bf16 %v705, %v703
        %v722 = vpack.c.bf16 %v706, %v704
        %v723 = vld [vmem:[%s342] sm:$0xf]
        %v724 = vld [vmem:[%s342 + $0x4] sm:$0xf]
        %v725 = vld [vmem:[%s342 + $0x8] sm:$0xf]
        %v726 = vld [vmem:[%s342 + $0xc] sm:$0xf]
        %v727 = vld [vmem:[%s342 + $0x10] sm:$0xf]
        %v728 = vld [vmem:[%s342 + $0x14] sm:$0xf]
        %v729 = vld [vmem:[%s342 + $0x18] sm:$0xf]
        %v730 = vld [vmem:[%s342 + $0x1c] sm:$0xf]
        %v731 = vld [vmem:[%s342 + $0x20] sm:$0xf]
        %v732 = vld [vmem:[%s342 + $0x24] sm:$0xf]
        %v733 = vld [vmem:[%s342 + $0x28] sm:$0xf]
        %v734 = vld [vmem:[%s342 + $0x2c] sm:$0xf]
        %v735 = vld [vmem:[%s342 + $0x30] sm:$0xf]
        %v736 = vld [vmem:[%s342 + $0x34] sm:$0xf]
        %v737 = vld [vmem:[%s342 + $0x38] sm:$0xf]
        %v738 = vld [vmem:[%s342 + $0x3c] sm:$0xf]
        %v739 = vld [vmem:[%s342 + $0x40] sm:$0xf]
        %v740 = vld [vmem:[%s342 + $0x44] sm:$0xf]
        %v741 = vld [vmem:[%s342 + $0x48] sm:$0xf]
        %v742 = vld [vmem:[%s342 + $0x4c] sm:$0xf]
        %v743 = vld [vmem:[%s342 + $0x50] sm:$0xf]
        %v744 = vld [vmem:[%s342 + $0x54] sm:$0xf]
        %v745 = vld [vmem:[%s342 + $0x58] sm:$0xf]
        %v746 = vld [vmem:[%s342 + $0x5c] sm:$0xf]
        %v747 = vld [vmem:[%s342 + $0x60] sm:$0xf]
        %v748 = vld [vmem:[%s342 + $0x64] sm:$0xf]
        %v749 = vld [vmem:[%s342 + $0x68] sm:$0xf]
        %v750 = vld [vmem:[%s342 + $0x6c] sm:$0xf]
        %v751 = vld [vmem:[%s342 + $0x70] sm:$0xf]
        %v752 = vld [vmem:[%s342 + $0x74] sm:$0xf]
        %v753 = vld [vmem:[%s342 + $0x78] sm:$0xf]
        %v754 = vld [vmem:[%s342 + $0x7c] sm:$0xf]
        %v787 = vunpack.c.l.b16 %v723
        %v788 = vunpack.c.l.b16 %v724
        %v789 = vunpack.c.l.b16 %v725
        %v790 = vunpack.c.l.b16 %v726
        %v791 = vunpack.c.l.b16 %v727
        %v792 = vunpack.c.l.b16 %v728
        %v793 = vunpack.c.l.b16 %v729
        %v794 = vunpack.c.l.b16 %v730
        %v795 = vunpack.c.l.b16 %v731
        %v796 = vunpack.c.l.b16 %v732
        %v797 = vunpack.c.l.b16 %v733
        %v798 = vunpack.c.l.b16 %v734
        %v799 = vunpack.c.l.b16 %v735
        %v800 = vunpack.c.l.b16 %v736
        %v801 = vunpack.c.l.b16 %v737
        %v802 = vunpack.c.l.b16 %v738
        %v803 = vunpack.c.l.b16 %v739
        %v804 = vunpack.c.l.b16 %v740
        %v805 = vunpack.c.l.b16 %v741
        %v806 = vunpack.c.l.b16 %v742
        %v807 = vunpack.c.l.b16 %v743
        %v808 = vunpack.c.l.b16 %v744
        %v809 = vunpack.c.l.b16 %v745
        %v810 = vunpack.c.l.b16 %v746
        %v811 = vunpack.c.l.b16 %v747
        %v812 = vunpack.c.l.b16 %v748
        %v813 = vunpack.c.l.b16 %v749
        %v814 = vunpack.c.l.b16 %v750
        %v815 = vunpack.c.l.b16 %v751
        %v816 = vunpack.c.l.b16 %v752
        %v817 = vunpack.c.l.b16 %v753
        %v818 = vunpack.c.l.b16 %v754
        %v819 = vpack.c.b16 %v788, %v787
        %v820 = vpack.c.b16 %v790, %v789
        %v821 = vpack.c.b16 %v792, %v791
        %v822 = vpack.c.b16 %v794, %v793
        %v823 = vpack.c.b16 %v796, %v795
        %v824 = vpack.c.b16 %v798, %v797
        %v825 = vpack.c.b16 %v800, %v799
        %v826 = vpack.c.b16 %v802, %v801
        %v827 = vpack.c.b16 %v804, %v803
        %v828 = vpack.c.b16 %v806, %v805
        %v829 = vpack.c.b16 %v808, %v807
        %v830 = vpack.c.b16 %v810, %v809
        %v831 = vpack.c.b16 %v812, %v811
        %v832 = vpack.c.b16 %v814, %v813
        %v833 = vpack.c.b16 %v816, %v815
        %v834 = vpack.c.b16 %v818, %v817
        %851 = vmatprep.subr.bf16.mxu0 0
        %852 = vmatpush1.bf16.msra.mxu0 %v819
        %853 = vmatprep.subr.bf16.mxu0 0
        %854 = vmatpush1.bf16.msra.mxu0 %v820
        %855 = vmatprep.subr.bf16.mxu0 0
        %856 = vmatpush1.bf16.msra.mxu0 %v821
        %857 = vmatprep.subr.bf16.mxu0 0
        %858 = vmatpush1.bf16.msra.mxu0 %v822
        %859 = vmatprep.subr.bf16.mxu0 0
        %860 = vmatpush1.bf16.msra.mxu0 %v823
        %861 = vmatprep.subr.bf16.mxu0 0
        %862 = vmatpush1.bf16.msra.mxu0 %v824
        %863 = vmatprep.subr.bf16.mxu0 0
        %864 = vmatpush1.bf16.msra.mxu0 %v825
        %865 = vmatprep.subr.bf16.mxu0 0
        %866 = vmatpush1.bf16.msra.mxu0 %v826
        %867 = vmatprep.subr.bf16.mxu0 0
        %868 = vmatpush1.bf16.msra.mxu0 %v827
        %869 = vmatprep.subr.bf16.mxu0 0
        %870 = vmatpush1.bf16.msra.mxu0 %v828
        %871 = vmatprep.subr.bf16.mxu0 0
        %872 = vmatpush1.bf16.msra.mxu0 %v829
        %873 = vmatprep.subr.bf16.mxu0 0
        %874 = vmatpush1.bf16.msra.mxu0 %v830
        %875 = vmatprep.subr.bf16.mxu0 0
        %876 = vmatpush1.bf16.msra.mxu0 %v831
        %877 = vmatprep.subr.bf16.mxu0 0
        %878 = vmatpush1.bf16.msra.mxu0 %v832
        %879 = vmatprep.subr.bf16.mxu0 0
        %880 = vmatpush1.bf16.msra.mxu0 %v833
        %881 = vmatprep.subr.bf16.mxu0 0
        %882 = vmatpush1.bf16.msra.mxu0 %v834
        %883 = vmatprep.mubr.bf16.mxu0 %v716
        %884 = vmatmul.mubr.bf16.gmra.mrb[0].mxu0 %v715
        %v885 = vpop.f32.mrb[0].mxu0
        %v886 = vadd.f32 0.0, %v885
        %v887 = vpop.f32.mrb[0].mxu0
        %v888 = vpop.f32.mrb[0].mxu0
        %v889 = vadd.f32 0.0, %v888
        %v890 = vpop.f32.mrb[0].mxu0
        %891 = vmatprep.mubr.bf16.mxu0 %v718
        %892 = vmatmul.mubr.bf16.gmra.mrb[0].mxu0 %v717
        %v893 = vpop.f32.mrb[0].mxu0
        %v894 = vadd.f32 0.0, %v893
        %v895 = vpop.f32.mrb[0].mxu0
        %v896 = vpop.f32.mrb[0].mxu0
        %v897 = vadd.f32 0.0, %v896
        %v898 = vpop.f32.mrb[0].mxu0
        %899 = vmatprep.mubr.bf16.mxu0 %v720
        %900 = vmatmul.mubr.bf16.gmra.mrb[0].mxu0 %v719
        %v901 = vpop.f32.mrb[0].mxu0
        %v902 = vadd.f32 0.0, %v901
        %v903 = vpop.f32.mrb[0].mxu0
        %v904 = vpop.f32.mrb[0].mxu0
        %v905 = vadd.f32 0.0, %v904
        %v906 = vpop.f32.mrb[0].mxu0
        %907 = vmatprep.mubr.bf16.mxu0 %v722
        %908 = vmatmul.mubr.bf16.gmra.mrb[0].mxu0 %v721
        %v909 = vpop.f32.mrb[0].mxu0
        %v910 = vadd.f32 0.0, %v909
        %v911 = vpop.f32.mrb[0].mxu0
        %v912 = vpop.f32.mrb[0].mxu0
        %v913 = vadd.f32 0.0, %v912
        %v914 = vpop.f32.mrb[0].mxu0
        %915 = vdwg.mxu0
        %v916 = vadd.f32 %v707, %v886
        %v917 = vadd.f32 %v708, %v889
        %v918 = vadd.f32 %v709, %v894
        %v919 = vadd.f32 %v710, %v897
        %v920 = vadd.f32 %v711, %v902
        %v921 = vadd.f32 %v712, %v905
        %v922 = vadd.f32 %v713, %v910
        %v923 = vadd.f32 %v714, %v913
        %924 = vst [vmem:[#allocation2] sm:$0xff] %v916
        %925 = vst [vmem:[#allocation2 + $0x8] sm:$0xff] %v917
        %926 = vst [vmem:[#allocation2 + $0x10] sm:$0xff] %v918
        %927 = vst [vmem:[#allocation2 + $0x18] sm:$0xff] %v919
        %928 = vst [vmem:[#allocation2 + $0x20] sm:$0xff] %v920
        %929 = vst [vmem:[#allocation2 + $0x28] sm:$0xff] %v921
        %930 = vst [vmem:[#allocation2 + $0x30] sm:$0xff] %v922
        %931 = vst [vmem:[#allocation2 + $0x38] sm:$0xff] %v923
        %p932 = scmp.eq.s32.totalorder %s33, 1
        // Predicated region
        $region65: #{mlp_forward.1} parent=39 // pred_check
          %p933 = pneg %p932
        $region66: #{mlp_forward.1} parent=39 // pred_check_branch
          %935 = sbr.rel (%p933) target = $region68
        $region67: #{mlp_forward.1} parent=39 // pred_region
          %v936 = vld [vmem:[#allocation2] sm:$0xff]
          %v937 = vld [vmem:[#allocation2 + $0x8] sm:$0xff]
          %v938 = vld [vmem:[#allocation2 + $0x10] sm:$0xff]
          %v939 = vld [vmem:[#allocation2 + $0x18] sm:$0xff]
          %v940 = vld [vmem:[#allocation2 + $0x20] sm:$0xff]
          %v941 = vld [vmem:[#allocation2 + $0x28] sm:$0xff]
          %v942 = vld [vmem:[#allocation2 + $0x30] sm:$0xff]
          %v943 = vld [vmem:[#allocation2 + $0x38] sm:$0xff]
          %v944 = vld [vmem:[#allocation11] sm:$0x1]
          %v946 = vlaneseq
          %v947 = vshrl.u32 %v946, 7
          %v948 = vsub.s32 0, %v947
          %v949 = vrot.slane %v944, %v948
          %v951 = vadd.f32 %v936, %v949
          %v952 = vadd.f32 %v937, %v949
          %v953 = vadd.f32 %v938, %v949
          %v954 = vadd.f32 %v939, %v949
          %v955 = vadd.f32 %v940, %v949
          %v956 = vadd.f32 %v941, %v949
          %v957 = vadd.f32 %v942, %v949
          %v958 = vadd.f32 %v943, %v949
          %959 = vst [vmem:[%s387] sm:$0xff] %v951
          %960 = vst [vmem:[%s387 + $0x8] sm:$0xff] %v952
          %961 = vst [vmem:[%s387 + $0x10] sm:$0xff] %v953
          %962 = vst [vmem:[%s387 + $0x18] sm:$0xff] %v954
          %963 = vst [vmem:[%s387 + $0x20] sm:$0xff] %v955
          %964 = vst [vmem:[%s387 + $0x28] sm:$0xff] %v956
          %965 = vst [vmem:[%s387 + $0x30] sm:$0xff] %v957
          %966 = vst [vmem:[%s387 + $0x38] sm:$0xff] %v958
        $region68: #{mlp_forward.1} parent=39 // pred_fallthru
          _
        %s967 = sand.u32 %s173, 1
        %s968 = scalar_lea.sflag [#allocation5], %s967
        %s969 = sand.u32 %s173, 1
        %s970 = smul.addr %s969, 64
        %s971 = scalar_lea.vmem [#allocation12], %s970
        // Predicated region
        $region69: #{mlp_forward.1} parent=39 // pred_check
          %p972 = pneg %p183
        $region70: #{mlp_forward.1} parent=39 // pred_check_branch
          %974 = sbr.rel (%p972) target = $region72
        $region71: #{mlp_forward.1} parent=39 // pred_region
          %s975 = smul.u32 8, %s32
          %s976 = ssub.s32 14, %s975
          %p977 = scmp.lt.s32.totalorder %s976, 8
          %s978 = scalar_select %p977, %s976, 8
          %s979 = smul.u32 128, %s978
          %s981 = ssub.s32 1024, %s979
          %982 = vsyncadd %s968, %s981
          %p983 = scmp.ne.s32.totalorder 0, %s979
          %s984 = smul.addr %s975, 128
          %s985 = scalar_lea.hbm %s5, %s984
          %s986 = smul.u32 8, %s978
          %s987 = sshll.u32 %s971, 4
          %s988 = int_to_ptr.vmem [resolvable:$true] %s987
          %s989 = sshll.u32 %s986, 4
          %993 = dma.vmem_to_hbm [thread:$0]  (%p983), %s988, %s989, %s985, %s968, 128, 128, 8
        $region72: #{mlp_forward.1} parent=39 // pred_fallthru
          _
      $region40: #{mlp_forward.1} parent=5 // pred_fallthru
        _
      %p994 = scmp.le.s32.totalorder 2, %s23
      // Predicated region
      $region73: #{mlp_forward.1} parent=5 // pred_check
        %p995 = pneg %p994
      $region74: #{mlp_forward.1} parent=5 // pred_check_branch
        %997 = sbr.rel (%p995) target = $region76
      $region75: #{mlp_forward.1} parent=5 // pred_region
        %s998 = ssub.s32 %s23, 2
        // Predicated region
        $region77: #{mlp_forward.1} parent=75 // pred_check
          %p999 = pneg %p189
        $region78: #{mlp_forward.1} parent=75 // pred_check_branch
          %1001 = sbr.rel (%p999) target = $region80
        $region79: #{mlp_forward.1} parent=75 // pred_region
          %s1002 = sand.u32 %s174, 1
          %s1003 = scalar_lea.sflag [#allocation5], %s1002
          %s1004 = sand.u32 %s174, 1
          %s1005 = smul.addr %s1004, 64
          %s1006 = scalar_lea.vmem [#allocation12], %s1005
          %1007 = dma.done %s1003, 1024
        $region80: #{mlp_forward.1} parent=75 // pred_fallthru
          _
      $region76: #{mlp_forward.1} parent=5 // pred_fallthru
        _
    $region6: #{mlp_forward.1} parent=1 // loop_footer
      %s27 = sadd.s32 1, %s23
    $region7: #{mlp_forward.1} parent=1 // loop_footer_branch
      %22 = sbr.rel target = $region3
    $region8: #{mlp_forward.1} parent=1 // loop_exit
      _
    %1008 = vsyncpa [#allocation4], 1
    %s1009 = scalar_lea.sflag [#allocation4], 1
    %1010 = vsyncpa %s1009, 1
    %1011 = vsyncpa [#allocation7], 1
    %s1012 = scalar_lea.sflag [#allocation7], 1
    %1013 = vsyncpa %s1012, 1
    %1014 = vsyncpa [#allocation10], 1
    %s1015 = scalar_lea.sflag [#allocation10], 1
    %1016 = vsyncpa %s1015, 1
    %1017 = vsyncpa [#allocation5], 1
    %s1018 = scalar_lea.sflag [#allocation5], 1
    %1019 = vsyncpa %s1018, 1

</llo_original>
